<compile_context>
chip_gen: v5e
topology: v5e:2x2
jax: 0.10.0
libtpu: 0.0.40
codegen_flags: <defaults>
</compile_context>

<pallas_src>
import functools

import jax
import jax.numpy as jnp
from jax.experimental import pallas as pl
from jax.experimental.pallas import tpu as pltpu


_PI_LANES = 128  # pi logits live in the first 128-lane group of the fused head


def _round_up(a, b):
    return (a + b - 1) // b * b


def _mdn_kernel(x_ref, w_ref, b_ref, pi_ref, mu_ref, *, pi_width):
    # Cast x to the (possibly narrower) weight dtype on the VPU right before
    # the dot; a same-dtype astype is a no-op.  Single fused matmul for both
    # heads, f32 accumulation, f32 bias add.
    x = x_ref[...].astype(w_ref.dtype)
    y = jnp.dot(x, w_ref[...], preferred_element_type=jnp.float32) + b_ref[...]

    # Softmax restricted to the first 128-lane group (static, lane-aligned
    # slice).  Lanes [G, 128) carry bias -1e30, so exp underflows to exactly
    # 0 and they drop out of the max and the denominator -> no mask needed.
    logits = y[:, :pi_width]
    m = jnp.max(logits, axis=1, keepdims=True)
    e = jnp.exp(logits - m)
    denom = jnp.sum(e, axis=1, keepdims=True)
    pi_ref[...] = e / denom

    # mu slab: everything after the pi lane group (zero-padded columns).
    mu_ref[...] = y[:, pi_width:]


def prepare_mdn_params(w_pi, b_pi, w_mu, b_mu, param_dtype=jnp.float32):
    """Fuse + lane-pad the pi/mu heads ONCE (amortized over forward calls).

    Inputs are the nn.Linear parameters pre-transposed to (in, out):
      w_pi: (H, G), b_pi: (G,), w_mu: (H, G*D), b_mu: (G*D,)
    Returns (w_fused, b_fused):
      w_fused: (H, 128 + round_up(G*D, 128)) in `param_dtype`
      b_fused: (1, same) f32; padded pi lanes hold -1e30 so the in-kernel
               softmax zeroes them without masking.
    """
    H, G = w_pi.shape
    GD = w_mu.shape[1]
    gd_pad = _round_up(GD, 128)
    N = _PI_LANES + gd_pad

    w = jnp.zeros((H, N), param_dtype)
    w = w.at[:, :G].set(w_pi.astype(param_dtype))
    w = w.at[:, _PI_LANES:_PI_LANES + GD].set(w_mu.astype(param_dtype))

    b = jnp.zeros((1, N), jnp.float32)
    b = b.at[0, G:_PI_LANES].set(-1e30)               # kill padded pi lanes
    b = b.at[0, :G].set(b_pi.astype(jnp.float32))
    b = b.at[0, _PI_LANES:_PI_LANES + GD].set(b_mu.astype(jnp.float32))
    return w, b


def mixure_decoder_forward(x, w_fused, b_fused, num_gaussians, output_dim):
    """x: (B, H) f32.  w_fused/b_fused from prepare_mdn_params()."""
    B, H = x.shape
    G, D = num_gaussians, output_dim
    GD = G * D
    N = w_fused.shape[1]
    gd_pad = N - _PI_LANES
    assert gd_pad >= GD

    # ---- batch tile: fixed 512-row target, ragged last block via cdiv ----
    tb = min(512, _round_up(B, 8))
    if B > 8 and pl.cdiv(B, tb) < 2:
        # guarantee >=2 grid steps so v7x's second TensorCore is used
        tb = _round_up(pl.cdiv(B, 2), 8)

    # ---- conservative VMEM budget (fits v5e's 16 MiB scoped default) ----
    def vmem_est(t):
        return (w_fused.size * w_fused.dtype.itemsize          # W, Buffered(1)
                + b_fused.size * 4                              # bias
                + 2 * t * H * x.dtype.itemsize                  # x, double-buffered
                + 2 * t * _PI_LANES * 4 + 2 * t * gd_pad * 4)   # outputs

    budget = 12 << 20
    while tb > 8 and vmem_est(tb) > budget:
        tb = max(8, _round_up(tb // 2, 8))

    compiler_kwargs = dict(dimension_semantics=("parallel",))
    if vmem_est(tb) > budget:
        # Resident W itself is large: raise the scoped-VMEM limit.
        # TODO(synk): for heads too large for v7x's 64 MiB VMEM, stream W over
        # an extra N grid axis instead of keeping it fully resident.
        compiler_kwargs["vmem_limit_bytes"] = int(vmem_est(tb) * 1.25)

    grid = (pl.cdiv(B, tb),)
    kernel = functools.partial(_mdn_kernel, pi_width=_PI_LANES)

    pi_pad, mu_pad = pl.pallas_call(
        kernel,
        out_shape=(jax.ShapeDtypeStruct((B, _PI_LANES), jnp.float32),
                   jax.ShapeDtypeStruct((B, gd_pad), jnp.float32)),
        grid=grid,
        in_specs=[
            pl.BlockSpec((tb, H), lambda i: (i, 0)),                 # x: batch-tiled
            pl.BlockSpec((H, N), lambda i: (0, 0),
                         pipeline_mode=pl.Buffered(1)),              # fused W: resident
            pl.BlockSpec((1, N), lambda i: (0, 0),
                         pipeline_mode=pl.Buffered(1)),              # fused bias
        ],
        out_specs=(pl.BlockSpec((tb, _PI_LANES), lambda i: (i, 0)),
                   pl.BlockSpec((tb, gd_pad), lambda i: (i, 0))),
        compiler_params=pltpu.CompilerParams(**compiler_kwargs),
    )(x, w_fused, b_fused)

    pi = pi_pad[:, :G]
    mu = mu_pad[:, :GD].reshape(B, G, D)
    # sigma is a pure elementwise function of mu in the reference forward
    # (sigma is overwritten by clamp(mu, 1e-5)); computing it here keeps the
    # kernel's HBM writeback at a single mu slab.
    sigma = jnp.maximum(mu, 1e-5)
    return pi, sigma, mu


if __name__ == "__main__":
    # Small shapes consistent with the module: batch=8, input_dim(hidden)=32,
    # num_gaussians=2, output_dim=2.
    B, H, G, D = 8, 32, 2, 2

    key = jax.random.PRNGKey(0)
    kx, kwp, kbp, kwm, kbm = jax.random.split(key, 5)

    x = jax.random.normal(kx, (B, H), dtype=jnp.float32)

    # Deterministic synthetic parameters (nn.Linear shapes, stored transposed
    # as (in, out) for the kernel).  The sigma Linear is dead code in forward.
    bound = 1.0 / (H ** 0.5)
    w_pi = jax.random.uniform(kwp, (H, G), jnp.float32, -bound, bound)
    b_pi = jax.random.uniform(kbp, (G,), jnp.float32, -bound, bound)
    w_mu = jax.random.normal(kwm, (H, G * D), dtype=jnp.float32)   # nn.init.normal_
    b_mu = jax.random.uniform(kbm, (G * D,), jnp.float32, -bound, bound)

    # Amortized, one-time parameter fusion/padding.
    w_fused, b_fused = prepare_mdn_params(w_pi, b_pi, w_mu, b_mu)

    pi, sigma, mu = mixure_decoder_forward(x, w_fused, b_fused, G, D)
    jax.block_until_ready((pi, sigma, mu))

    # Exact f32 reference (default param_dtype keeps module numerics).
    logits = x @ w_pi + b_pi
    pi_ref = jax.nn.softmax(logits, axis=1)
    mu_ref = (x @ w_mu + b_mu).reshape(B, G, D)
    sigma_ref = jnp.maximum(mu_ref, 1e-5)

    assert pi.shape == (B, G) and sigma.shape == (B, G, D) and mu.shape == (B, G, D)
    assert jnp.allclose(pi, pi_ref, atol=1e-4), float(jnp.max(jnp.abs(pi - pi_ref)))
    assert jnp.allclose(mu, mu_ref, atol=1e-3), float(jnp.max(jnp.abs(mu - mu_ref)))
    assert jnp.allclose(sigma, sigma_ref, atol=1e-3)
    assert jnp.allclose(jnp.sum(pi, axis=1), 1.0, atol=1e-5)

    print("KERNEL_OK")
</pallas_src>

<mosaic_0001>
module attributes {stable_mosaic.version = 11 : i64} {
  func.func @_mdn_kernel(%arg0: i32, %arg1: memref<8x32xf32, #tpu.memory_space<vmem>>, %arg2: memref<32x256xf32, #tpu.memory_space<vmem>>, %arg3: memref<1x256xf32, #tpu.memory_space<vmem>>, %arg4: memref<8x128xf32, #tpu.memory_space<vmem>>, %arg5: memref<8x128xf32, #tpu.memory_space<vmem>>) attributes {dimension_semantics = [#tpu.dimension_semantics<parallel>], iteration_bounds = array<i64: 1>, scalar_prefetch = 0 : i64, scratch_operands = 0 : i64, tpu.core_type = #tpu.core_type<tc>, window_params = [{transform_indices = @transform_0, window_bounds = array<i64: 8, 32>}, {pipeline_mode = #tpu.pipeline_mode<synchronous>, transform_indices = @transform_1, window_bounds = array<i64: 32, 256>}, {pipeline_mode = #tpu.pipeline_mode<synchronous>, transform_indices = @transform_2, window_bounds = array<i64: 1, 256>}, {transform_indices = @transform_3, window_bounds = array<i64: 8, 128>}, {transform_indices = @transform_4, window_bounds = array<i64: 8, 128>}]} {
    %c0 = arith.constant 0 : index
    %c0_0 = arith.constant 0 : index
    %0 = vector.load %arg1[%c0, %c0_0] : memref<8x32xf32, #tpu.memory_space<vmem>>, vector<8x32xf32>
    %c0_1 = arith.constant 0 : index
    %c0_2 = arith.constant 0 : index
    %1 = vector.load %arg2[%c0_1, %c0_2] : memref<32x256xf32, #tpu.memory_space<vmem>>, vector<32x256xf32>
    %cst = arith.constant dense<0.000000e+00> : vector<8x256xf32>
    %2 = tpu.matmul %0, %1, %cst {dimension_numbers = #tpu.dot_dimension_numbers<[1], [0], [0], [1], [0, 0, 1, 1], [], []>} : vector<8x32xf32>, vector<32x256xf32>, vector<8x256xf32> -> vector<8x256xf32>
    %c0_3 = arith.constant 0 : index
    %c0_4 = arith.constant 0 : index
    %3 = vector.load %arg3[%c0_3, %c0_4] : memref<1x256xf32, #tpu.memory_space<vmem>>, vector<1x256xf32>
    %4 = vector.broadcast %3 : vector<1x256xf32> to vector<8x256xf32>
    %5 = arith.addf %2, %4 : vector<8x256xf32>
    %6 = vector.extract_strided_slice %5 {offsets = [0, 0], sizes = [8, 128], strides = [1, 1]} : vector<8x256xf32> to vector<8x128xf32>
    %cst_5 = arith.constant dense<0xFF800000> : vector<8xf32>
    %7 = vector.multi_reduction <maximumf>, %6, %cst_5 [1] : vector<8x128xf32> to vector<8xf32>
    %8 = vector.shape_cast %7 : vector<8xf32> to vector<8x1xf32>
    %9 = vector.broadcast %8 : vector<8x1xf32> to vector<8x128xf32>
    %10 = arith.subf %6, %9 : vector<8x128xf32>
    %11 = math.exp %10 : vector<8x128xf32>
    %cst_6 = arith.constant dense<0.000000e+00> : vector<8xf32>
    %12 = vector.multi_reduction <add>, %11, %cst_6 [1] : vector<8x128xf32> to vector<8xf32>
    %13 = vector.shape_cast %12 : vector<8xf32> to vector<8x1xf32>
    %14 = vector.broadcast %13 : vector<8x1xf32> to vector<8x128xf32>
    %15 = arith.divf %11, %14 : vector<8x128xf32>
    %c0_7 = arith.constant 0 : index
    %c0_8 = arith.constant 0 : index
    %16 = vector.load %arg4[%c0_7, %c0_8] : memref<8x128xf32, #tpu.memory_space<vmem>>, vector<8x128xf32>
    tpu.vector_store %arg4[%c0_7, %c0_8], %15 {strides = array<i32>} : memref<8x128xf32, #tpu.memory_space<vmem>>, vector<8x128xf32>,
    %17 = vector.extract_strided_slice %5 {offsets = [0, 128], sizes = [8, 128], strides = [1, 1]} : vector<8x256xf32> to vector<8x128xf32>
    %c0_9 = arith.constant 0 : index
    %c0_10 = arith.constant 0 : index
    %18 = vector.load %arg5[%c0_9, %c0_10] : memref<8x128xf32, #tpu.memory_space<vmem>>, vector<8x128xf32>
    tpu.vector_store %arg5[%c0_9, %c0_10], %17 {strides = array<i32>} : memref<8x128xf32, #tpu.memory_space<vmem>>, vector<8x128xf32>,
    return
  }
  func.func @transform_0(%arg0: i32) -> (i32, i32) {
    %c0_i32 = arith.constant 0 : i32
    %c0_i32_0 = arith.constant 0 : i32
    return %arg0, %c0_i32 : i32, i32
  }
  func.func @transform_1(%arg0: i32) -> (i32, i32) {
    %c0_i32 = arith.constant 0 : i32
    %c0_i32_0 = arith.constant 0 : i32
    %c0_i32_1 = arith.constant 0 : i32
    return %c0_i32, %c0_i32_0 : i32, i32
  }
  func.func @transform_2(%arg0: i32) -> (i32, i32) {
    %c0_i32 = arith.constant 0 : i32
    %c0_i32_0 = arith.constant 0 : i32
    %c0_i32_1 = arith.constant 0 : i32
    return %c0_i32, %c0_i32_0 : i32, i32
  }
  func.func @transform_3(%arg0: i32) -> (i32, i32) {
    %c0_i32 = arith.constant 0 : i32
    %c0_i32_0 = arith.constant 0 : i32
    return %arg0, %c0_i32 : i32, i32
  }
  func.func @transform_4(%arg0: i32) -> (i32, i32) {
    %c0_i32 = arith.constant 0 : i32
    %c0_i32_0 = arith.constant 0 : i32
    return %arg0, %c0_i32 : i32, i32
  }
}

</mosaic_0001>

<llo_original>
// kernel: tpu_custom_call.1
$region0: #{tpu_custom_call.1}
  #allocation0 [shape = 'u32[]', space=smem, size = 0x4, offset = 0x4, fixed_abs, tag = 'smem constant byte address 0x4 - core index']
  #allocation1 [shape = 'u32[72,128]{1,0:T(1,128)}', space=vmem, size = 0x9000, scoped, tag = 'internal scratch']
  %s0 = inlined_call_operand.hbm [shape: f32[8,32], index: 0, kind: input, shape index: {}]
  %s1 = inlined_call_operand.hbm [shape: f32[32,256], index: 1, kind: input, shape index: {}]
  %s2 = inlined_call_operand.hbm [shape: f32[1,256], index: 2, kind: input, shape index: {}]
  %s3 = inlined_call_operand.hbm [shape: f32[8,128], index: 3, kind: output, shape index: {0}]
  %s4 = inlined_call_operand.hbm [shape: f32[8,128], index: 4, kind: output, shape index: {1}]
  %5 = xla_tuple %s3, %s4
  %s6 = sld [smem:[#allocation0]]
  $region42: #{tpu_custom_call.1} parent=0
    _
  %s8 = ssub.s32 1, %s6
  %s9 = scalar_select 0, %s8, %s6
  $region1: #{tpu_custom_call.1} parent=0
    #allocation2 [shape = 'u8[4096]{0}', space=vmem, size = 0x1000, scoped, tag = 'input window, operand 0, single buffered']
    #allocation3 [shape = 's32[1]{0}', space=sflag, size = 0x4, scoped, tag = 'scoped memory for tpu_custom_call.1']
    #allocation4 [shape = 's32[1]{0}', space=sflag, size = 0x4, scoped, tag = 'scoped memory for tpu_custom_call.1']
    #allocation5 [shape = 'u8[32768]{0}', space=vmem, size = 0x8000, scoped, tag = 'input window, operand 1, single buffered']
    #allocation6 [shape = 's32[1]{0}', space=sflag, size = 0x4, scoped, tag = 'scoped memory for tpu_custom_call.1']
    #allocation7 [shape = 'u8[1024]{0}', space=vmem, size = 0x400, scoped, tag = 'input window, operand 2, single buffered']
    #allocation8 [shape = 'u8[4096]{0}', space=vmem, size = 0x1000, scoped, tag = 'output window, operand 0, single buffered']
    #allocation9 [shape = 'u8[4096]{0}', space=vmem, size = 0x1000, scoped, tag = 'output window, operand 1, single buffered']
    #allocation10 [shape = 's32[1]{0}', space=sflag, size = 0x4, scoped, tag = 'scoped memory for tpu_custom_call.1']
    %10 = vsyncpa [#allocation3], 0
    %11 = vsyncpa [#allocation6], 0
    %12 = vsyncpa [#allocation4], 0
    %13 = vsyncpa [#allocation10], 0
    // Predicated region
    $region2: #{tpu_custom_call.1} parent=1 // pred_check
      _
    $region3: #{tpu_custom_call.1} parent=1 // pred_check_branch
      %15 = sbr.rel (0) target = $region5
    $region4: #{tpu_custom_call.1} parent=1 // pred_region
      %17 = vsyncadd [#allocation3], 0
      %s19 = sshll.u32 %s0, 4
      %s20 = int_to_ptr.hbm [resolvable:$true] %s19
      %s21 = sshll.u32 [#allocation2], 4
      %s22 = int_to_ptr.vmem [resolvable:$true] %s21
      %24 = dma.hbm_to_vmem [thread:$0]  %s20, 128, %s22, [#allocation3]
    $region5: #{tpu_custom_call.1} parent=1 // pred_fallthru
      _
    // Predicated region
    $region6: #{tpu_custom_call.1} parent=1 // pred_check
      _
    $region7: #{tpu_custom_call.1} parent=1 // pred_check_branch
      %26 = sbr.rel (0) target = $region9
    $region8: #{tpu_custom_call.1} parent=1 // pred_region
      %28 = vsyncadd [#allocation6], 0
      %s29 = sshll.u32 %s1, 4
      %s30 = int_to_ptr.hbm [resolvable:$true] %s29
      %s31 = sshll.u32 [#allocation5], 4
      %s32 = int_to_ptr.vmem [resolvable:$true] %s31
      %37 = dma.hbm_to_vmem [thread:$0]  %s30, 1024, %s32, [#allocation6], 256, 256, 16
    $region9: #{tpu_custom_call.1} parent=1 // pred_fallthru
      _
    // Predicated region
    $region10: #{tpu_custom_call.1} parent=1 // pred_check
      _
    $region11: #{tpu_custom_call.1} parent=1 // pred_check_branch
      %39 = sbr.rel (0) target = $region13
    $region12: #{tpu_custom_call.1} parent=1 // pred_region
      %41 = vsyncadd [#allocation6], 0
      %s43 = sshll.u32 %s2, 4
      %s44 = int_to_ptr.hbm [resolvable:$true] %s43
      %s45 = sshll.u32 [#allocation7], 4
      %s46 = int_to_ptr.vmem [resolvable:$true] %s45
      %48 = dma.hbm_to_vmem [thread:$0]  %s44, 32, %s46, [#allocation6]
    $region13: #{tpu_custom_call.1} parent=1 // pred_fallthru
      _
    // Predicated region
    $region14: #{tpu_custom_call.1} parent=1 // pred_check
      _
    $region15: #{tpu_custom_call.1} parent=1 // pred_check_branch
      %50 = sbr.rel (0) target = $region17
    $region16: #{tpu_custom_call.1} parent=1 // pred_region
      %52 = dma.done [#allocation3], 128
    $region17: #{tpu_custom_call.1} parent=1 // pred_fallthru
      _
    // Predicated region
    $region18: #{tpu_custom_call.1} parent=1 // pred_check
      _
    $region19: #{tpu_custom_call.1} parent=1 // pred_check_branch
      %54 = sbr.rel (0) target = $region21
    $region20: #{tpu_custom_call.1} parent=1 // pred_region
      %56 = dma.done [#allocation6], 1024
    $region21: #{tpu_custom_call.1} parent=1 // pred_fallthru
      _
    // Predicated region
    $region22: #{tpu_custom_call.1} parent=1 // pred_check
      _
    $region23: #{tpu_custom_call.1} parent=1 // pred_check_branch
      %58 = sbr.rel (0) target = $region25
    $region24: #{tpu_custom_call.1} parent=1 // pred_region
      %60 = dma.done [#allocation6], 32
    $region25: #{tpu_custom_call.1} parent=1 // pred_fallthru
      _
    %v61 = vld [vmem:[#allocation2] sm:$0xff]
    %v62 = vld [vmem:[#allocation5] sm:$0xff]
    %v63 = vld [vmem:[#allocation5 + $0x8] sm:$0xff]
    %v64 = vld [vmem:[#allocation5 + $0x10] sm:$0xff]
    %v65 = vld [vmem:[#allocation5 + $0x18] sm:$0xff]
    %v66 = vld [vmem:[#allocation5 + $0x20] sm:$0xff]
    %v67 = vld [vmem:[#allocation5 + $0x28] sm:$0xff]
    %v68 = vld [vmem:[#allocation5 + $0x30] sm:$0xff]
    %v69 = vld [vmem:[#allocation5 + $0x38] sm:$0xff]
    %v70 = vld [vmem:[#allocation7] sm:$0x3]
    %v72 = vperm.slane %v70, 0
    %v73 = vperm.slane %v70, 1
    %vm76 = vcmask 261120
    %v78 = vsel %vm76, %v61, 0
    %80 = vmatpush.msra.mxu0 0.0
    %81 = vmatpush.msra.mxu0 0.0
    %82 = vmatpush.msra.mxu0 0.0
    %83 = vmatpush.msra.mxu0 0.0
    %84 = vmatpush.msra.mxu0 0.0
    %85 = vmatpush.msra.mxu0 0.0
    %86 = vmatpush.msra.mxu0 0.0
    %87 = vmatpush.msra.mxu0 0.0
    %88 = vmatpush.msra.mxu0 0.0
    %89 = vmatpush.msra.mxu0 0.0
    %90 = vmatpush.msra.mxu0 0.0
    %91 = vmatpush.msra.mxu0 0.0
    %92 = vmatpush.msra.mxu0 %v68
    %93 = vmatpush.msra.mxu0 %v66
    %94 = vmatpush.msra.mxu0 %v64
    %95 = vmatpush.msra.mxu0 %v62
    %96 = vmatmul.f32.gmra.mxu0 %v78
    %v97 = vpop.f32.mrf.mxu0
    %v98 = vadd.f32 %v72, %v97
    %99 = vdwg.mxu0
    %100 = vmatpush.msra.mxu0 0.0
    %101 = vmatpush.msra.mxu0 0.0
    %102 = vmatpush.msra.mxu0 0.0
    %103 = vmatpush.msra.mxu0 0.0
    %104 = vmatpush.msra.mxu0 0.0
    %105 = vmatpush.msra.mxu0 0.0
    %106 = vmatpush.msra.mxu0 0.0
    %107 = vmatpush.msra.mxu0 0.0
    %108 = vmatpush.msra.mxu0 0.0
    %109 = vmatpush.msra.mxu0 0.0
    %110 = vmatpush.msra.mxu0 0.0
    %111 = vmatpush.msra.mxu0 0.0
    %112 = vmatpush.msra.mxu0 %v69
    %113 = vmatpush.msra.mxu0 %v67
    %114 = vmatpush.msra.mxu0 %v65
    %115 = vmatpush.msra.mxu0 %v63
    %116 = vmatmul.f32.gmra.mxu0 %v78
    %v117 = vpop.f32.mrf.mxu0
    %v118 = vadd.f32 %v73, %v117
    %119 = vdwg.mxu0
    %120 = vmax.xlane.f32.xlu0 %v98
    %v121 = vpop.xlane.xlu0 %120
    %v122 = vsub.f32 %v98, %v121
    %v123 = vmul.f32 %v122, 1.442695
    %v124 = vpow.pop %v123
    %125 = vadd.xlane.f32.xlu0 %v124
    %v126 = vpop.xlane.xlu0 %125
    %v127 = vrcp.pop %v126
    %v128 = vmul.f32 %v126, %v127
    %v129 = vsub.f32 1.0, %v128
    %v130 = vmul.f32 %v127, %v129
    %v131 = vadd.f32 %v127, %v130
    %vm132 = vweird.f32 %v126
    %vm133 = vweird.f32 %v127
    %vm134 = vmor %vm132, %vm133
    %v135 = vsel %vm134, %v127, %v131
    %v136 = vand.u32 2147483647, %v126
    %vm137 = vcmp.eq.f32.partialorder %v136, 8.507059e+37
    %v138 = vand.u32 %v126, 2147483648
    %v139 = vor.u32 1.1754944e-38, %v138
    %v140 = vsel %vm137, %v139, %v135
    %v141 = vmul.f32 %v124, %v140
    %142 = vst [vmem:[#allocation8] sm:$0xff] %v141
    %143 = vst [vmem:[#allocation9] sm:$0xff] %v118
    // Predicated region
    $region26: #{tpu_custom_call.1} parent=1 // pred_check
      _
    $region27: #{tpu_custom_call.1} parent=1 // pred_check_branch
      %145 = sbr.rel (0) target = $region29
    $region28: #{tpu_custom_call.1} parent=1 // pred_region
      %147 = vsyncadd [#allocation4], 0
      %s149 = sshll.u32 [#allocation8], 4
      %s150 = int_to_ptr.vmem [resolvable:$true] %s149
      %s151 = sshll.u32 %s3, 4
      %s152 = int_to_ptr.hbm [resolvable:$true] %s151
      %154 = dma.vmem_to_hbm [thread:$0]  %s150, 128, %s152, [#allocation4]
    $region29: #{tpu_custom_call.1} parent=1 // pred_fallthru
      _
    // Predicated region
    $region30: #{tpu_custom_call.1} parent=1 // pred_check
      _
    $region31: #{tpu_custom_call.1} parent=1 // pred_check_branch
      %156 = sbr.rel (0) target = $region33
    $region32: #{tpu_custom_call.1} parent=1 // pred_region
      %158 = vsyncadd [#allocation10], 0
      %s160 = sshll.u32 [#allocation9], 4
      %s161 = int_to_ptr.vmem [resolvable:$true] %s160
      %s162 = sshll.u32 %s4, 4
      %s163 = int_to_ptr.hbm [resolvable:$true] %s162
      %165 = dma.vmem_to_hbm [thread:$0]  %s161, 128, %s163, [#allocation10]
    $region33: #{tpu_custom_call.1} parent=1 // pred_fallthru
      _
    // Predicated region
    $region34: #{tpu_custom_call.1} parent=1 // pred_check
      _
    $region35: #{tpu_custom_call.1} parent=1 // pred_check_branch
      %167 = sbr.rel (0) target = $region37
    $region36: #{tpu_custom_call.1} parent=1 // pred_region
      %169 = dma.done [#allocation4], 128
    $region37: #{tpu_custom_call.1} parent=1 // pred_fallthru
      _
    // Predicated region
    $region38: #{tpu_custom_call.1} parent=1 // pred_check
      _
    $region39: #{tpu_custom_call.1} parent=1 // pred_check_branch
      %171 = sbr.rel (0) target = $region41
    $region40: #{tpu_custom_call.1} parent=1 // pred_region
      %173 = dma.done [#allocation10], 128
    $region41: #{tpu_custom_call.1} parent=1 // pred_fallthru
      _
    %174 = vsyncpa [#allocation3], 1
    %175 = vsyncpa [#allocation6], 1
    %176 = vsyncpa [#allocation4], 1
    %177 = vsyncpa [#allocation10], 1

</llo_original>
